<compile_context>
chip_gen: v7x
topology: tpu7x:2x2x1
jax: 0.10.0
libtpu: 0.0.40
codegen_flags: <defaults>
</compile_context>

<pallas_src>
import math

import jax
import jax.numpy as jnp
from jax.experimental import pallas as pl
from jax.experimental.pallas import tpu as pltpu


# ----------------------------------------------------------------------------- helpers
def _round_up(n: int, m: int) -> int:
    return ((n + m - 1) // m) * m


def _sublane_multiple(dtype) -> int:
    # packed sublanes: 8 for 4-byte, 16 for 2-byte, 32 for 1-byte dtypes
    itemsize = jnp.dtype(dtype).itemsize
    return max(8, 32 // max(1, itemsize))


def _vmem_capacity_bytes() -> int:
    try:
        return int(pltpu.get_tpu_info().vmem_capacity_bytes)
    except Exception:
        return 64 << 20  # conservative fallback (v7x per-TC VMEM)


# ----------------------------------------------------------------------------- PE table
def make_positional_encoding(
    d_model: int, max_seq_length: int = 5000, dtype=jnp.float32
) -> jnp.ndarray:
    """Sinusoidal PE table in the *model dtype*, shape [max_seq_length, 1, d_model].

    Matches the PyTorch buffer `pe` exactly (unsqueeze(0).transpose(0, 1)).
    Built once at init so the forward pass never slices/casts it.
    """
    assert d_model % 2 == 0, "d_model must be even (same assumption as PyTorch module)"
    position = jnp.arange(max_seq_length, dtype=jnp.float32)[:, None]          # [L, 1]
    div_term = jnp.exp(
        jnp.arange(0, d_model, 2, dtype=jnp.float32) * (-math.log(10000.0) / d_model)
    )                                                                           # [D/2]
    angles = position * div_term                                                # [L, D/2]
    pe = jnp.zeros((max_seq_length, d_model), dtype=jnp.float32)
    pe = pe.at[:, 0::2].set(jnp.sin(angles))
    pe = pe.at[:, 1::2].set(jnp.cos(angles))
    return pe.astype(dtype)[:, None, :]                                         # [L, 1, D]


# ----------------------------------------------------------------------------- kernels
def _pe_add_kernel_3d(x_ref, pe_ref, o_ref):
    # x_ref: [ts, B, D]; pe_ref: [ts, 1, D] -> size-1-sublane broadcast over batch.
    o_ref[...] = (x_ref[...] + pe_ref[...]).astype(o_ref.dtype)


def _pe_add_kernel_2d(x_ref, pe_ref, o_ref):
    # batch == 1 fast path: dense [ts, D] blocks (fully packed sublanes).
    o_ref[...] = (x_ref[...] + pe_ref[...]).astype(o_ref.dtype)


# ----------------------------------------------------------------------------- tiling
_MIN_SPLIT_BYTES = 2 << 20  # below this, a single tile is fine (step overhead dominates)


def _choose_seq_tile(seq_len: int, batch: int, d_model: int, dtype,
                     target_block_bytes: int, vmem_cap: int) -> int:
    itemsize = jnp.dtype(dtype).itemsize
    mult = _sublane_multiple(dtype)
    row_bytes = max(1, batch * d_model * itemsize)

    # VMEM footprint ~ 2*(x_in + out + pe) <= 6 * x_block; leave headroom for Mosaic.
    usable = max(8 << 20, vmem_cap - (8 << 20))
    blk = min(target_block_bytes, usable // 6)

    rows = max(mult, blk // row_bytes)
    rows = (rows // mult) * mult

    # Keep >= 2 grid steps when the tensor is big enough that the extra pipeline
    # step is free, so v7x's two TensorCores both get work ("parallel" axis).
    if seq_len * row_bytes >= _MIN_SPLIT_BYTES:
        half = _round_up((seq_len + 1) // 2, mult)
        rows = min(rows, half)

    if rows >= seq_len:
        rows = _round_up(seq_len, mult)   # single (possibly padded-edge) tile
    return int(rows)


# ----------------------------------------------------------------------------- forward
def positional_encoding_forward(x: jnp.ndarray, pe: jnp.ndarray,
                                tile_seq: int | None = None,
                                target_block_bytes: int = 8 << 20,
                                donate_x: bool = False) -> jnp.ndarray:
    """x: [seq_len, batch, d_model]; pe: [max_seq, 1, d_model] (or [max_seq, d_model])."""
    seq_len, batch, d_model = x.shape

    # Accept either the PyTorch-shaped buffer or a 2D table; unit-dim reshapes are free.
    pe3 = pe if pe.ndim == 3 else pe[:, None, :]
    max_seq = pe3.shape[0]
    assert pe3.shape[-1] == d_model, "pe d_model mismatch"
    assert seq_len <= max_seq, "seq_len exceeds the positional-encoding table"
    if pe3.dtype != x.dtype:
        # TODO(synk): build the table in the model dtype at init to avoid this extra pass.
        pe3 = pe3.astype(x.dtype)

    itemsize = jnp.dtype(x.dtype).itemsize
    mult = _sublane_multiple(x.dtype)
    vmem_cap = _vmem_capacity_bytes()

    if tile_seq is not None:
        ts = _round_up(min(int(tile_seq), _round_up(seq_len, mult)), mult)
    else:
        ts = _choose_seq_tile(seq_len, batch, d_model, x.dtype,
                              target_block_bytes, vmem_cap)
    grid = (pl.cdiv(seq_len, ts),)
    # NOTE: a padded-edge pe block (last block running past seq_len) only pairs
    # with output rows that Pallas masks, so it cannot affect results.

    x_block_bytes = ts * batch * d_model * itemsize
    pe_block_bytes = ts * d_model * itemsize
    vmem_needed = 2 * (2 * x_block_bytes + pe_block_bytes)  # double-buffered in/out/pe
    vmem_limit = int(min(vmem_cap - (4 << 20),
                         max(16 << 20, vmem_needed + (4 << 20))))

    cost = pl.CostEstimate(
        flops=seq_len * batch * d_model,
        transcendentals=0,
        bytes_accessed=2 * x.size * itemsize + seq_len * d_model * itemsize,
    )
    compiler_params = pltpu.CompilerParams(
        dimension_semantics=("parallel",),   # independent seq tiles -> v7x 2-TC sharding
        vmem_limit_bytes=vmem_limit,
    )
    aliases = {0: 0} if donate_x else {}

    if batch == 1:
        # Dense 2D path: sublanes fully packed instead of 1-of-8.
        x2 = x.reshape(seq_len, d_model)              # free (unit-dim squeeze)
        pe2 = pe3.reshape(max_seq, d_model)           # free (unit-dim squeeze)
        out2 = pl.pallas_call(
            _pe_add_kernel_2d,
            out_shape=jax.ShapeDtypeStruct((seq_len, d_model), x.dtype),
            grid_spec=pltpu.PrefetchScalarGridSpec(
                num_scalar_prefetch=0,
                grid=grid,
                in_specs=[
                    pl.BlockSpec((ts, d_model), lambda i: (i, 0)),
                    pl.BlockSpec((ts, d_model), lambda i: (i, 0)),
                ],
                out_specs=pl.BlockSpec((ts, d_model), lambda i: (i, 0)),
            ),
            compiler_params=compiler_params,
            cost_estimate=cost,
            input_output_aliases=aliases,
        )(x2, pe2)
        return out2.reshape(seq_len, 1, d_model)

    return pl.pallas_call(
        _pe_add_kernel_3d,
        out_shape=jax.ShapeDtypeStruct((seq_len, batch, d_model), x.dtype),
        grid_spec=pltpu.PrefetchScalarGridSpec(
            num_scalar_prefetch=0,
            grid=grid,
            in_specs=[
                pl.BlockSpec((ts, batch, d_model), lambda i: (i, 0, 0)),
                pl.BlockSpec((ts, 1, d_model), lambda i: (i, 0, 0)),
            ],
            out_specs=pl.BlockSpec((ts, batch, d_model), lambda i: (i, 0, 0)),
        ),
        compiler_params=compiler_params,
        cost_estimate=cost,
        input_output_aliases=aliases,
    )(x, pe3)


# ----------------------------------------------------------------------------- tests
if __name__ == "__main__":
    max_seq_length = 64
    d_model = 32
    pe_f32 = make_positional_encoding(d_model, max_seq_length, dtype=jnp.float32)

    key = jax.random.PRNGKey(0)

    # Case 1: small shape consistent with the module (3D path, single tile).
    seq_len, batch = 8, 2
    x = jax.random.normal(key, (seq_len, batch, d_model), dtype=jnp.float32)
    out = jax.block_until_ready(positional_encoding_forward(x, pe_f32))
    ref = x + pe_f32[:seq_len]
    assert out.shape == (seq_len, batch, d_model)
    assert jnp.allclose(out, ref, atol=1e-6), "mismatch vs reference (case 1)"

    # Case 2: multi-tile grid with a non-divisible edge block (pipelined path,
    # pe indexed out of the full un-sliced table).
    seq_len2 = 20
    x2 = jax.random.normal(jax.random.PRNGKey(1), (seq_len2, batch, d_model),
                           dtype=jnp.float32)
    out2 = jax.block_until_ready(positional_encoding_forward(x2, pe_f32, tile_seq=8))
    ref2 = x2 + pe_f32[:seq_len2]
    assert jnp.allclose(out2, ref2, atol=1e-6), "mismatch vs reference (case 2)"

    # Case 3: batch == 1 dense 2D fast path, multi-tile.
    seq_len3 = 24
    x3 = jax.random.normal(jax.random.PRNGKey(2), (seq_len3, 1, d_model),
                           dtype=jnp.float32)
    out3 = jax.block_until_ready(positional_encoding_forward(x3, pe_f32, tile_seq=8))
    ref3 = x3 + pe_f32[:seq_len3]
    assert jnp.allclose(out3, ref3, atol=1e-6), "mismatch vs reference (case 3)"

    # Case 4: bf16 end-to-end (table built in the model dtype at init -> no
    # per-call cast; exercises the 16-row sublane rounding).
    pe_bf16 = make_positional_encoding(d_model, max_seq_length, dtype=jnp.bfloat16)
    seq_len4 = 16
    x4 = jax.random.normal(jax.random.PRNGKey(3), (seq_len4, batch, d_model),
                           dtype=jnp.bfloat16)
    out4 = jax.block_until_ready(positional_encoding_forward(x4, pe_bf16))
    ref4 = x4 + pe_bf16[:seq_len4]
    assert jnp.allclose(out4.astype(jnp.float32), ref4.astype(jnp.float32),
                        atol=2e-2), "mismatch vs reference (case 4)"

    print("KERNEL_OK")
</pallas_src>

<mosaic_0001>
module attributes {stable_mosaic.version = 11 : i64} {
  func.func @_pe_add_kernel_3d(%arg0: i32, %arg1: memref<8x2x32xf32, #tpu.memory_space<vmem>>, %arg2: memref<8x1x32xf32, #tpu.memory_space<vmem>>, %arg3: memref<8x2x32xf32, #tpu.memory_space<vmem>>) attributes {dimension_semantics = [#tpu.dimension_semantics<parallel>], iteration_bounds = array<i64: 1>, scalar_prefetch = 0 : i64, scratch_operands = 0 : i64, tpu.core_type = #tpu.core_type<tc>, window_params = [{transform_indices = @transform_0, window_bounds = array<i64: 8, 2, 32>}, {transform_indices = @transform_1, window_bounds = array<i64: 8, 1, 32>}, {transform_indices = @transform_2, window_bounds = array<i64: 8, 2, 32>}]} {
    %c0 = arith.constant 0 : index
    %c0_0 = arith.constant 0 : index
    %c0_1 = arith.constant 0 : index
    %0 = vector.load %arg1[%c0, %c0_0, %c0_1] : memref<8x2x32xf32, #tpu.memory_space<vmem>>, vector<8x2x32xf32>
    %c0_2 = arith.constant 0 : index
    %c0_3 = arith.constant 0 : index
    %c0_4 = arith.constant 0 : index
    %1 = vector.load %arg2[%c0_2, %c0_3, %c0_4] : memref<8x1x32xf32, #tpu.memory_space<vmem>>, vector<8x1x32xf32>
    %2 = vector.broadcast %1 : vector<8x1x32xf32> to vector<8x2x32xf32>
    %3 = arith.addf %0, %2 : vector<8x2x32xf32>
    %c0_5 = arith.constant 0 : index
    %c0_6 = arith.constant 0 : index
    %c0_7 = arith.constant 0 : index
    %4 = vector.load %arg3[%c0_5, %c0_6, %c0_7] : memref<8x2x32xf32, #tpu.memory_space<vmem>>, vector<8x2x32xf32>
    tpu.vector_store %arg3[%c0_5, %c0_6, %c0_7], %3 {strides = array<i32>} : memref<8x2x32xf32, #tpu.memory_space<vmem>>, vector<8x2x32xf32>,
    return
  }
  func.func @transform_0(%arg0: i32) -> (i32, i32, i32) {
    %c0_i32 = arith.constant 0 : i32
    %c0_i32_0 = arith.constant 0 : i32
    %c0_i32_1 = arith.constant 0 : i32
    return %arg0, %c0_i32, %c0_i32_0 : i32, i32, i32
  }
  func.func @transform_1(%arg0: i32) -> (i32, i32, i32) {
    %c0_i32 = arith.constant 0 : i32
    %c0_i32_0 = arith.constant 0 : i32
    %c0_i32_1 = arith.constant 0 : i32
    return %arg0, %c0_i32, %c0_i32_0 : i32, i32, i32
  }
  func.func @transform_2(%arg0: i32) -> (i32, i32, i32) {
    %c0_i32 = arith.constant 0 : i32
    %c0_i32_0 = arith.constant 0 : i32
    %c0_i32_1 = arith.constant 0 : i32
    return %arg0, %c0_i32, %c0_i32_0 : i32, i32, i32
  }
}

</mosaic_0001>

<llo_original>
// kernel: tpu_custom_call.1
$region0: #{tpu_custom_call.1}
  #allocation0 [shape = 'u32[]', space=smem, size = 0x4, offset = 0x4, fixed_abs, tag = 'smem constant byte address 0x4 - core index']
  #allocation1 [shape = 'u32[144,128]{1,0:T(1,128)}', space=vmem, size = 0x12000, scoped, tag = 'internal scratch']
  %s0 = inlined_call_operand.vmem [shape: f32[8,2,32], index: 0, kind: input, shape index: {}]
  %s1 = inlined_call_operand.vmem [shape: f32[64,1,32], index: 1, kind: input, shape index: {}]
  %s2 = inlined_call_operand.hbm [shape: f32[8,2,32], index: 2, kind: output, shape index: {}]
  %s3 = sld [smem:[#allocation0]]
  $region18: #{tpu_custom_call.1} parent=0
    _
  %s5 = ssub.s32 1, %s3
  %s6 = scalar_select 0, %s5, %s3
  $region1: #{tpu_custom_call.1} parent=0
    #allocation2 [shape = 'u8[8192]{0}', space=vmem, size = 0x2000, scoped, tag = 'output window, operand 0, single buffered']
    #allocation3 [shape = 's32[1]{0}', space=sflag, size = 0x4, scoped, tag = 'scoped memory for tpu_custom_call.1']
    %7 = vsyncpa [#allocation3], 0
    // Predicated region
    $region2: #{tpu_custom_call.1} parent=1 // pred_check
      _
    $region3: #{tpu_custom_call.1} parent=1 // pred_check_branch
      %9 = sbr.rel (0) target = $region5
    $region4: #{tpu_custom_call.1} parent=1 // pred_region
      _
    $region5: #{tpu_custom_call.1} parent=1 // pred_fallthru
      _
    // Predicated region
    $region6: #{tpu_custom_call.1} parent=1 // pred_check
      _
    $region7: #{tpu_custom_call.1} parent=1 // pred_check_branch
      %11 = sbr.rel (0) target = $region9
    $region8: #{tpu_custom_call.1} parent=1 // pred_region
      _
    $region9: #{tpu_custom_call.1} parent=1 // pred_fallthru
      _
    %v12 = vld [vmem:[%s0] sm:$0x3]
    %v13 = vld [vmem:[%s0 + $0x2] sm:$0x3]
    %v14 = vld [vmem:[%s0 + $0x4] sm:$0x3]
    %v15 = vld [vmem:[%s0 + $0x6] sm:$0x3]
    %v16 = vld [vmem:[%s0 + $0x8] sm:$0x3]
    %v17 = vld [vmem:[%s0 + $0xa] sm:$0x3]
    %v18 = vld [vmem:[%s0 + $0xc] sm:$0x3]
    %v19 = vld [vmem:[%s0 + $0xe] sm:$0x3]
    %v20 = vld [vmem:[%s1] sm:$0x1]
    %v21 = vld [vmem:[%s1 + $0x1] sm:$0x1]
    %v22 = vld [vmem:[%s1 + $0x2] sm:$0x1]
    %v23 = vld [vmem:[%s1 + $0x3] sm:$0x1]
    %v24 = vld [vmem:[%s1 + $0x4] sm:$0x1]
    %v25 = vld [vmem:[%s1 + $0x5] sm:$0x1]
    %v26 = vld [vmem:[%s1 + $0x6] sm:$0x1]
    %v27 = vld [vmem:[%s1 + $0x7] sm:$0x1]
    %v36 = vlaneseq
    %v37 = vshrl.u32 %v36, 7
    %v38 = vsub.s32 0, %v37
    %v39 = vrot.slane %v20, %v38
    %v40 = vlaneseq
    %v41 = vshrl.u32 %v40, 7
    %v42 = vsub.s32 0, %v41
    %v43 = vrot.slane %v21, %v42
    %v44 = vlaneseq
    %v45 = vshrl.u32 %v44, 7
    %v46 = vsub.s32 0, %v45
    %v47 = vrot.slane %v22, %v46
    %v48 = vlaneseq
    %v49 = vshrl.u32 %v48, 7
    %v50 = vsub.s32 0, %v49
    %v51 = vrot.slane %v23, %v50
    %v52 = vlaneseq
    %v53 = vshrl.u32 %v52, 7
    %v54 = vsub.s32 0, %v53
    %v55 = vrot.slane %v24, %v54
    %v56 = vlaneseq
    %v57 = vshrl.u32 %v56, 7
    %v58 = vsub.s32 0, %v57
    %v59 = vrot.slane %v25, %v58
    %v60 = vlaneseq
    %v61 = vshrl.u32 %v60, 7
    %v62 = vsub.s32 0, %v61
    %v63 = vrot.slane %v26, %v62
    %v64 = vlaneseq
    %v65 = vshrl.u32 %v64, 7
    %v66 = vsub.s32 0, %v65
    %v67 = vrot.slane %v27, %v66
    %v76 = vadd.f32 %v12, %v39
    %v77 = vadd.f32 %v13, %v43
    %v78 = vadd.f32 %v14, %v47
    %v79 = vadd.f32 %v15, %v51
    %v80 = vadd.f32 %v16, %v55
    %v81 = vadd.f32 %v17, %v59
    %v82 = vadd.f32 %v18, %v63
    %v83 = vadd.f32 %v19, %v67
    %vm84 = vcmask 254976
    %85 = vst.msk [vmem:[#allocation2] sm:$0x3] %vm84, %v76
    %86 = vst.msk [vmem:[#allocation2 + $0x2] sm:$0x3] %vm84, %v77
    %87 = vst.msk [vmem:[#allocation2 + $0x4] sm:$0x3] %vm84, %v78
    %88 = vst.msk [vmem:[#allocation2 + $0x6] sm:$0x3] %vm84, %v79
    %89 = vst.msk [vmem:[#allocation2 + $0x8] sm:$0x3] %vm84, %v80
    %90 = vst.msk [vmem:[#allocation2 + $0xa] sm:$0x3] %vm84, %v81
    %91 = vst.msk [vmem:[#allocation2 + $0xc] sm:$0x3] %vm84, %v82
    %92 = vst.msk [vmem:[#allocation2 + $0xe] sm:$0x3] %vm84, %v83
    // Predicated region
    $region10: #{tpu_custom_call.1} parent=1 // pred_check
      _
    $region11: #{tpu_custom_call.1} parent=1 // pred_check_branch
      %94 = sbr.rel (0) target = $region13
    $region12: #{tpu_custom_call.1} parent=1 // pred_region
      %s96 = ssub.s32 256, 256
      %97 = vsyncadd [#allocation3], %s96
      %s98 = sshll.u32 [#allocation2], 4
      %s99 = int_to_ptr.vmem [resolvable:$true] %s98
      %104 = dma.vmem_to_hbm [thread:$0]  %s99, 256, %s2, [#allocation3], 32, 32, 2
    $region13: #{tpu_custom_call.1} parent=1 // pred_fallthru
      _
    // Predicated region
    $region14: #{tpu_custom_call.1} parent=1 // pred_check
      _
    $region15: #{tpu_custom_call.1} parent=1 // pred_check_branch
      %106 = sbr.rel (0) target = $region17
    $region16: #{tpu_custom_call.1} parent=1 // pred_region
      %107 = dma.done [#allocation3], 256
    $region17: #{tpu_custom_call.1} parent=1 // pred_fallthru
      _
    %108 = vsyncpa [#allocation3], 1

</llo_original>
